<compile_context>
chip_gen: v6e
topology: v6e:2x2x1
jax: 0.10.0
libtpu: 0.0.40
codegen_flags: <defaults>
</compile_context>

<pallas_src>
import functools

import jax
import jax.numpy as jnp
from jax.experimental import pallas as pl
from jax.experimental.pallas import tpu as pltpu


def _focal_loss_kernel(x_ref, t_ref, o_ref, *, C, k, gamma, alpha,
                       n_rows, tile_rows, ragged):
    """One grid step: (tile_rows, k*C) folded logits tile -> (1, k) partial sum."""
    x = x_ref[...].astype(jnp.float32)          # (T, W): upcast in VMEM, not HBM
    t = t_ref[...]                              # (T, k) int32 targets
    T = x.shape[0]

    # Local class index within one C-wide segment (shared by all k segments).
    col = jax.lax.broadcasted_iota(jnp.int32, (T, C), 1)

    if k == 1:
        # Unfolded fallback (C >= 128, or N has no small divisor): original layout.
        m = jnp.max(x, axis=-1, keepdims=True)                        # (T, 1)
        z = x - m
        e = jnp.exp(z)
        z_t = jnp.sum(jnp.where(col == t, z, 0.0), axis=-1, keepdims=True)
        sum_e = jnp.sum(e, axis=-1, keepdims=True)                    # (T, 1)
    else:
        # Per-original-row (= per C-segment) max, broadcast back to full width so
        # one full-width exp keeps the EUP lane-dense while the log-softmax stays
        # exactly as numerically stable as the PyTorch reference.
        m_parts = []
        for g in range(k):
            mg = jnp.max(x[:, g * C:(g + 1) * C], axis=-1, keepdims=True)
            m_parts.append(jnp.broadcast_to(mg, (T, C)))
        m_full = jnp.concatenate(m_parts, axis=-1)                    # (T, W)

        z = x - m_full
        e = jnp.exp(z)

        # Segmented target-gather and sum(exp): contiguous lane slices + narrow
        # reductions (exact f32 arithmetic; fused one-hot select, no materialized
        # one-hot matrix).
        zt_parts, se_parts = [], []
        for g in range(k):
            zg = z[:, g * C:(g + 1) * C]
            eg = e[:, g * C:(g + 1) * C]
            tg = t[:, g:g + 1]                                        # (T, 1)
            sel = jnp.where(col == tg, zg, 0.0)
            zt_parts.append(jnp.sum(sel, axis=-1, keepdims=True))
            se_parts.append(jnp.sum(eg, axis=-1, keepdims=True))
        z_t = jnp.concatenate(zt_parts, axis=-1)                      # (T, k)
        sum_e = jnp.concatenate(se_parts, axis=-1)                    # (T, k)

    logpt = z_t - jnp.log(sum_e)                                      # (T, k)
    pt = jnp.exp(logpt)

    # alpha * (target > 0) + (1 - alpha) * (target <= 0)
    logpt_w = logpt * jnp.where(t > 0, alpha, 1.0 - alpha)

    one_minus_pt = 1.0 - pt
    g_val = float(gamma)
    if g_val == int(g_val) and 0 <= int(g_val) <= 8:   # integer gamma: avoid EUP pow
        w = jnp.ones_like(one_minus_pt)
        for _ in range(int(g_val)):
            w = w * one_minus_pt
    else:
        w = one_minus_pt ** g_val
    loss = -1.0 * w * logpt_w                                         # (T, k)

    if ragged:
        # Last tile reads rows past the end of the array (undefined values): mask
        # them out of this tile's partial sum.  Full tiles skip this entirely.
        row = (jax.lax.broadcasted_iota(jnp.int32, loss.shape, 0)
               + pl.program_id(0) * tile_rows)
        loss = jnp.where(row < n_rows, loss, 0.0)

    o_ref[...] = jnp.sum(loss, axis=0, keepdims=True)                 # (1, k) partial


def focal_loss(logits, target, *, gamma=2.0, alpha=0.25, size_average=True,
               tile_rows=None):
    """Pallas TPU implementation of FocalLoss.forward."""
    N, C = logits.shape
    itemsize = jnp.dtype(logits.dtype).itemsize

    # Lane folding factor: largest k <= min(128 // C, 8) dividing N, so the
    # wrapper reshape is a free, layout-preserving bitcast (no pad / no copy).
    # k == 1 (C >= 128, or N prime/odd) falls back to the plain (N, C) layout.
    k = 1
    if C < 128:
        for cand in range(max(1, min(128 // C, 8)), 0, -1):
            if N % cand == 0:
                k = cand
                break
    R = N // k
    W = k * C

    x = logits.reshape(R, W)                       # free reshape, native dtype
    t = target.reshape(R, k).astype(jnp.int32)

    # VMEM budget: double-buffered logits tile + the lane-padded
    # (tile_rows, k) -> (tile_rows, 128-lane) int32 target tile.  Keep the total
    # resident footprint <= ~8 MiB so it fits v5e's 16 MiB scoped default and
    # v7x's 64 MiB physical VMEM with headroom, while tiles stay large enough to
    # amortize the ~0.35 us per-grid-step cost.
    w_pad = ((W + 127) // 128) * 128
    bytes_per_row = 2 * (w_pad * itemsize + 128 * 4)   # 2x = double buffering
    if tile_rows is None:
        budget = 8 * 1024 * 1024
        tile_rows = budget // bytes_per_row
    tile_rows = max(8, (int(tile_rows) // 8) * 8)
    tile_rows = min(tile_rows, ((R + 7) // 8) * 8)

    n_tiles = pl.cdiv(R, tile_rows)
    ragged = (R % tile_rows) != 0

    kernel = functools.partial(
        _focal_loss_kernel, C=C, k=k, gamma=gamma, alpha=alpha,
        n_rows=R, tile_rows=tile_rows, ragged=ragged)

    partials = pl.pallas_call(
        kernel,
        out_shape=jax.ShapeDtypeStruct((n_tiles, 1, k), jnp.float32),
        grid=(n_tiles,),
        in_specs=[
            pl.BlockSpec((tile_rows, W), lambda i: (i, 0)),   # folded logits tile
            pl.BlockSpec((tile_rows, k), lambda i: (i, 0)),   # folded targets tile
        ],
        out_specs=pl.BlockSpec((None, 1, k), lambda i: (i, 0, 0)),  # per-tile partial
        compiler_params=pltpu.CompilerParams(
            dimension_semantics=("parallel",)),               # independent steps
        cost_estimate=pl.CostEstimate(
            flops=int(10 * N * C),
            transcendentals=int(N * C + 3 * N),
            bytes_accessed=int(N * C * itemsize + N * 4 + n_tiles * k * 4),
        ),
    )(x, t)

    total = jnp.sum(partials)
    if size_average:
        return total / jnp.float32(N)
    return total


def _focal_loss_ref(logits, target, *, gamma=2.0, alpha=0.25, size_average=True):
    """Pure-JAX reference matching the PyTorch forward exactly."""
    target = target.reshape(-1)
    logpt_full = jax.nn.log_softmax(logits, axis=-1)
    logpt = jnp.take_along_axis(logpt_full, target[:, None], axis=-1)[:, 0]
    pt = jnp.exp(logpt)
    logpt = (logpt * alpha * (target > 0).astype(logits.dtype)
             + logpt * (1.0 - alpha) * (target <= 0).astype(logits.dtype))
    loss = -1.0 * (1.0 - pt) ** gamma * logpt
    return jnp.mean(loss) if size_average else jnp.sum(loss)


if __name__ == "__main__":
    gamma, alpha = 2.0, 0.25
    key = jax.random.PRNGKey(0)
    k_logits, k_target, k_logits2, k_target2 = jax.random.split(key, 4)

    # Folded path: C=32 -> k=4 lane fold (width 128), N=52 -> 13 folded rows,
    # tile_rows=8 -> grid=(2,) with a ragged, masked last tile.
    N, C = 52, 32
    logits = jax.random.normal(k_logits, (N, C), dtype=jnp.float32)
    target = jax.random.randint(k_target, (N,), 0, C, dtype=jnp.int32)

    loss = focal_loss(logits, target, gamma=gamma, alpha=alpha,
                      size_average=True, tile_rows=8)
    loss = jax.block_until_ready(loss)
    ref = _focal_loss_ref(logits, target, gamma=gamma, alpha=alpha,
                          size_average=True)
    assert jnp.allclose(loss, ref, atol=1e-5, rtol=1e-5), (loss, ref)

    # Sum reduction on the same folded layout.
    loss_sum = focal_loss(logits, target, gamma=gamma, alpha=alpha,
                          size_average=False, tile_rows=8)
    loss_sum = jax.block_until_ready(loss_sum)
    ref_sum = _focal_loss_ref(logits, target, gamma=gamma, alpha=alpha,
                              size_average=False)
    assert jnp.allclose(loss_sum, ref_sum, atol=1e-5, rtol=1e-5), (loss_sum, ref_sum)

    # Unfolded fallback path (prime N -> k=1), auto tile size.
    N2 = 17
    logits2 = jax.random.normal(k_logits2, (N2, C), dtype=jnp.float32)
    target2 = jax.random.randint(k_target2, (N2,), 0, C, dtype=jnp.int32)
    loss2 = focal_loss(logits2, target2, gamma=gamma, alpha=alpha,
                       size_average=True)
    loss2 = jax.block_until_ready(loss2)
    ref2 = _focal_loss_ref(logits2, target2, gamma=gamma, alpha=alpha,
                           size_average=True)
    assert jnp.allclose(loss2, ref2, atol=1e-5, rtol=1e-5), (loss2, ref2)

    print("KERNEL_OK")
</pallas_src>

<mosaic_0001>
module attributes {stable_mosaic.version = 11 : i64} {
  func.func @_focal_loss_kernel(%arg0: i32, %arg1: memref<8x128xf32, #tpu.memory_space<vmem>>, %arg2: memref<8x4xi32, #tpu.memory_space<vmem>>, %arg3: memref<1x1x4xf32, #tpu.memory_space<vmem>>) attributes {dimension_semantics = [#tpu.dimension_semantics<parallel>], iteration_bounds = array<i64: 2>, scalar_prefetch = 0 : i64, scratch_operands = 0 : i64, tpu.core_type = #tpu.core_type<tc>, window_params = [{transform_indices = @transform_0, window_bounds = array<i64: 8, 128>}, {transform_indices = @transform_1, window_bounds = array<i64: 8, 4>}, {transform_indices = @transform_2, window_bounds = array<i64: 1, 1, 4>}]} {
    %c0 = arith.constant 0 : index
    %c0_0 = arith.constant 0 : index
    %0 = vector.load %arg1[%c0, %c0_0] : memref<8x128xf32, #tpu.memory_space<vmem>>, vector<8x128xf32>
    %c0_1 = arith.constant 0 : index
    %c0_2 = arith.constant 0 : index
    %1 = vector.load %arg2[%c0_1, %c0_2] : memref<8x4xi32, #tpu.memory_space<vmem>>, vector<8x4xi32>
    %2 = tpu.iota {dimensions = array<i32: 1>} : vector<8x32xi32>
    %3 = vector.extract_strided_slice %0 {offsets = [0, 0], sizes = [8, 32], strides = [1, 1]} : vector<8x128xf32> to vector<8x32xf32>
    %cst = arith.constant dense<0xFF800000> : vector<8xf32>
    %4 = vector.multi_reduction <maximumf>, %3, %cst [1] : vector<8x32xf32> to vector<8xf32>
    %5 = vector.shape_cast %4 : vector<8xf32> to vector<8x1xf32>
    %6 = vector.shape_cast %5 : vector<8x1xf32> to vector<8x1xf32>
    %7 = vector.broadcast %6 : vector<8x1xf32> to vector<8x32xf32>
    %8 = vector.extract_strided_slice %0 {offsets = [0, 32], sizes = [8, 32], strides = [1, 1]} : vector<8x128xf32> to vector<8x32xf32>
    %cst_3 = arith.constant dense<0xFF800000> : vector<8xf32>
    %9 = vector.multi_reduction <maximumf>, %8, %cst_3 [1] : vector<8x32xf32> to vector<8xf32>
    %10 = vector.shape_cast %9 : vector<8xf32> to vector<8x1xf32>
    %11 = vector.shape_cast %10 : vector<8x1xf32> to vector<8x1xf32>
    %12 = vector.broadcast %11 : vector<8x1xf32> to vector<8x32xf32>
    %13 = vector.extract_strided_slice %0 {offsets = [0, 64], sizes = [8, 32], strides = [1, 1]} : vector<8x128xf32> to vector<8x32xf32>
    %cst_4 = arith.constant dense<0xFF800000> : vector<8xf32>
    %14 = vector.multi_reduction <maximumf>, %13, %cst_4 [1] : vector<8x32xf32> to vector<8xf32>
    %15 = vector.shape_cast %14 : vector<8xf32> to vector<8x1xf32>
    %16 = vector.shape_cast %15 : vector<8x1xf32> to vector<8x1xf32>
    %17 = vector.broadcast %16 : vector<8x1xf32> to vector<8x32xf32>
    %18 = vector.extract_strided_slice %0 {offsets = [0, 96], sizes = [8, 32], strides = [1, 1]} : vector<8x128xf32> to vector<8x32xf32>
    %cst_5 = arith.constant dense<0xFF800000> : vector<8xf32>
    %19 = vector.multi_reduction <maximumf>, %18, %cst_5 [1] : vector<8x32xf32> to vector<8xf32>
    %20 = vector.shape_cast %19 : vector<8xf32> to vector<8x1xf32>
    %21 = vector.shape_cast %20 : vector<8x1xf32> to vector<8x1xf32>
    %22 = vector.broadcast %21 : vector<8x1xf32> to vector<8x32xf32>
    %23 = tpu.concatenate %7, %12, %17, %22 in 1 : vector<8x32xf32>, vector<8x32xf32>, vector<8x32xf32>, vector<8x32xf32> -> vector<8x128xf32>
    %24 = arith.subf %0, %23 : vector<8x128xf32>
    %25 = math.exp %24 : vector<8x128xf32>
    %26 = vector.extract_strided_slice %24 {offsets = [0, 0], sizes = [8, 32], strides = [1, 1]} : vector<8x128xf32> to vector<8x32xf32>
    %27 = vector.extract_strided_slice %25 {offsets = [0, 0], sizes = [8, 32], strides = [1, 1]} : vector<8x128xf32> to vector<8x32xf32>
    %28 = vector.extract_strided_slice %1 {offsets = [0, 0], sizes = [8, 1], strides = [1, 1]} : vector<8x4xi32> to vector<8x1xi32>
    %29 = vector.broadcast %28 : vector<8x1xi32> to vector<8x32xi32>
    %30 = arith.cmpi eq, %2, %29 : vector<8x32xi32>
    %cst_6 = arith.constant 0.000000e+00 : f32
    %31 = vector.broadcast %cst_6 : f32 to vector<8x32xf32>
    %32 = arith.select %30, %26, %31 : vector<8x32xi1>, vector<8x32xf32>
    %cst_7 = arith.constant dense<0.000000e+00> : vector<8xf32>
    %33 = vector.multi_reduction <add>, %32, %cst_7 [1] : vector<8x32xf32> to vector<8xf32>
    %34 = vector.shape_cast %33 : vector<8xf32> to vector<8x1xf32>
    %cst_8 = arith.constant dense<0.000000e+00> : vector<8xf32>
    %35 = vector.multi_reduction <add>, %27, %cst_8 [1] : vector<8x32xf32> to vector<8xf32>
    %36 = vector.shape_cast %35 : vector<8xf32> to vector<8x1xf32>
    %37 = vector.extract_strided_slice %24 {offsets = [0, 32], sizes = [8, 32], strides = [1, 1]} : vector<8x128xf32> to vector<8x32xf32>
    %38 = vector.extract_strided_slice %25 {offsets = [0, 32], sizes = [8, 32], strides = [1, 1]} : vector<8x128xf32> to vector<8x32xf32>
    %39 = vector.extract_strided_slice %1 {offsets = [0, 1], sizes = [8, 1], strides = [1, 1]} : vector<8x4xi32> to vector<8x1xi32>
    %40 = vector.broadcast %39 : vector<8x1xi32> to vector<8x32xi32>
    %41 = arith.cmpi eq, %2, %40 : vector<8x32xi32>
    %cst_9 = arith.constant 0.000000e+00 : f32
    %42 = vector.broadcast %cst_9 : f32 to vector<8x32xf32>
    %43 = arith.select %41, %37, %42 : vector<8x32xi1>, vector<8x32xf32>
    %cst_10 = arith.constant dense<0.000000e+00> : vector<8xf32>
    %44 = vector.multi_reduction <add>, %43, %cst_10 [1] : vector<8x32xf32> to vector<8xf32>
    %45 = vector.shape_cast %44 : vector<8xf32> to vector<8x1xf32>
    %cst_11 = arith.constant dense<0.000000e+00> : vector<8xf32>
    %46 = vector.multi_reduction <add>, %38, %cst_11 [1] : vector<8x32xf32> to vector<8xf32>
    %47 = vector.shape_cast %46 : vector<8xf32> to vector<8x1xf32>
    %48 = vector.extract_strided_slice %24 {offsets = [0, 64], sizes = [8, 32], strides = [1, 1]} : vector<8x128xf32> to vector<8x32xf32>
    %49 = vector.extract_strided_slice %25 {offsets = [0, 64], sizes = [8, 32], strides = [1, 1]} : vector<8x128xf32> to vector<8x32xf32>
    %50 = vector.extract_strided_slice %1 {offsets = [0, 2], sizes = [8, 1], strides = [1, 1]} : vector<8x4xi32> to vector<8x1xi32>
    %51 = vector.broadcast %50 : vector<8x1xi32> to vector<8x32xi32>
    %52 = arith.cmpi eq, %2, %51 : vector<8x32xi32>
    %cst_12 = arith.constant 0.000000e+00 : f32
    %53 = vector.broadcast %cst_12 : f32 to vector<8x32xf32>
    %54 = arith.select %52, %48, %53 : vector<8x32xi1>, vector<8x32xf32>
    %cst_13 = arith.constant dense<0.000000e+00> : vector<8xf32>
    %55 = vector.multi_reduction <add>, %54, %cst_13 [1] : vector<8x32xf32> to vector<8xf32>
    %56 = vector.shape_cast %55 : vector<8xf32> to vector<8x1xf32>
    %cst_14 = arith.constant dense<0.000000e+00> : vector<8xf32>
    %57 = vector.multi_reduction <add>, %49, %cst_14 [1] : vector<8x32xf32> to vector<8xf32>
    %58 = vector.shape_cast %57 : vector<8xf32> to vector<8x1xf32>
    %59 = vector.extract_strided_slice %24 {offsets = [0, 96], sizes = [8, 32], strides = [1, 1]} : vector<8x128xf32> to vector<8x32xf32>
    %60 = vector.extract_strided_slice %25 {offsets = [0, 96], sizes = [8, 32], strides = [1, 1]} : vector<8x128xf32> to vector<8x32xf32>
    %61 = vector.extract_strided_slice %1 {offsets = [0, 3], sizes = [8, 1], strides = [1, 1]} : vector<8x4xi32> to vector<8x1xi32>
    %62 = vector.broadcast %61 : vector<8x1xi32> to vector<8x32xi32>
    %63 = arith.cmpi eq, %2, %62 : vector<8x32xi32>
    %cst_15 = arith.constant 0.000000e+00 : f32
    %64 = vector.broadcast %cst_15 : f32 to vector<8x32xf32>
    %65 = arith.select %63, %59, %64 : vector<8x32xi1>, vector<8x32xf32>
    %cst_16 = arith.constant dense<0.000000e+00> : vector<8xf32>
    %66 = vector.multi_reduction <add>, %65, %cst_16 [1] : vector<8x32xf32> to vector<8xf32>
    %67 = vector.shape_cast %66 : vector<8xf32> to vector<8x1xf32>
    %cst_17 = arith.constant dense<0.000000e+00> : vector<8xf32>
    %68 = vector.multi_reduction <add>, %60, %cst_17 [1] : vector<8x32xf32> to vector<8xf32>
    %69 = vector.shape_cast %68 : vector<8xf32> to vector<8x1xf32>
    %70 = tpu.concatenate %34, %45, %56, %67 in 1 : vector<8x1xf32>, vector<8x1xf32>, vector<8x1xf32>, vector<8x1xf32> -> vector<8x4xf32>
    %71 = tpu.concatenate %36, %47, %58, %69 in 1 : vector<8x1xf32>, vector<8x1xf32>, vector<8x1xf32>, vector<8x1xf32> -> vector<8x4xf32>
    %72 = math.log %71 : vector<8x4xf32>
    %73 = arith.subf %70, %72 : vector<8x4xf32>
    %74 = math.exp %73 : vector<8x4xf32>
    %c0_i32 = arith.constant 0 : i32
    %75 = vector.broadcast %c0_i32 : i32 to vector<8x4xi32>
    %76 = arith.cmpi sgt, %1, %75 : vector<8x4xi32>
    %cst_18 = arith.constant 2.500000e-01 : f32
    %cst_19 = arith.constant 7.500000e-01 : f32
    %77 = vector.broadcast %cst_18 : f32 to vector<8x4xf32>
    %78 = vector.broadcast %cst_19 : f32 to vector<8x4xf32>
    %79 = arith.select %76, %77, %78 : vector<8x4xi1>, vector<8x4xf32>
    %80 = arith.mulf %73, %79 : vector<8x4xf32>
    %cst_20 = arith.constant 1.000000e+00 : f32
    %81 = vector.broadcast %cst_20 : f32 to vector<8x4xf32>
    %82 = arith.subf %81, %74 : vector<8x4xf32>
    %cst_21 = arith.constant 1.000000e+00 : f32
    %83 = vector.broadcast %cst_21 : f32 to vector<8x4xf32>
    %84 = arith.mulf %83, %82 : vector<8x4xf32>
    %85 = arith.mulf %84, %82 : vector<8x4xf32>
    %cst_22 = arith.constant -1.000000e+00 : f32
    %86 = vector.broadcast %cst_22 : f32 to vector<8x4xf32>
    %87 = arith.mulf %86, %85 : vector<8x4xf32>
    %88 = arith.mulf %87, %80 : vector<8x4xf32>
    %89 = tpu.iota {dimensions = array<i32: 0>} : vector<8x4xi32>
    %c8_i32 = arith.constant 8 : i32
    %90 = arith.muli %arg0, %c8_i32 : i32
    %91 = vector.broadcast %90 : i32 to vector<8x4xi32>
    %92 = arith.addi %89, %91 : vector<8x4xi32>
    %c13_i32 = arith.constant 13 : i32
    %93 = vector.broadcast %c13_i32 : i32 to vector<8x4xi32>
    %94 = arith.cmpi slt, %92, %93 : vector<8x4xi32>
    %cst_23 = arith.constant 0.000000e+00 : f32
    %95 = vector.broadcast %cst_23 : f32 to vector<8x4xf32>
    %96 = arith.select %94, %88, %95 : vector<8x4xi1>, vector<8x4xf32>
    %cst_24 = arith.constant dense<0.000000e+00> : vector<4xf32>
    %97 = vector.multi_reduction <add>, %96, %cst_24 [0] : vector<8x4xf32> to vector<4xf32>
    %98 = vector.shape_cast %97 : vector<4xf32> to vector<1x4xf32>
    %c0_25 = arith.constant 0 : index
    %c0_26 = arith.constant 0 : index
    %c0_27 = arith.constant 0 : index
    %99 = vector.load %arg3[%c0_25, %c0_26, %c0_27] : memref<1x1x4xf32, #tpu.memory_space<vmem>>, vector<1x1x4xf32>
    %100 = vector.shape_cast %99 : vector<1x1x4xf32> to vector<1x4xf32>
    %101 = vector.shape_cast %98 : vector<1x4xf32> to vector<1x1x4xf32>
    tpu.vector_store %arg3[%c0_25, %c0_26, %c0_27], %101 {strides = array<i32>} : memref<1x1x4xf32, #tpu.memory_space<vmem>>, vector<1x1x4xf32>,
    return
  }
  func.func @transform_0(%arg0: i32) -> (i32, i32) {
    %c0_i32 = arith.constant 0 : i32
    %c0_i32_0 = arith.constant 0 : i32
    return %arg0, %c0_i32 : i32, i32
  }
  func.func @transform_1(%arg0: i32) -> (i32, i32) {
    %c0_i32 = arith.constant 0 : i32
    %c0_i32_0 = arith.constant 0 : i32
    return %arg0, %c0_i32 : i32, i32
  }
  func.func @transform_2(%arg0: i32) -> (i32, i32, i32) {
    %c0_i32 = arith.constant 0 : i32
    %c0_i32_0 = arith.constant 0 : i32
    %c0_i32_1 = arith.constant 0 : i32
    return %arg0, %c0_i32, %c0_i32_0 : i32, i32, i32
  }
}

</mosaic_0001>

<llo_original>
// kernel: tpu_custom_call.1
$region0: #{tpu_custom_call.1}
  #allocation0 [shape = 'u32[]', space=smem, size = 0x4, offset = 0x4, fixed_abs, tag = 'smem constant byte address 0x4 - core index']
  #allocation1 [shape = 'u32[144,128]{1,0:T(1,128)}', space=vmem, size = 0x12000, scoped, tag = 'internal scratch']
  %s0 = inlined_call_operand.vmem [shape: f32[13,128], index: 0, kind: input, shape index: {}]
  %s1 = inlined_call_operand.vmem [shape: s32[13,4], index: 1, kind: input, shape index: {}]
  %s2 = inlined_call_operand.hbm [shape: f32[2,1,4], index: 2, kind: output, shape index: {}]
  %s3 = sld [smem:[#allocation0]]
  $region41: #{tpu_custom_call.1} parent=0
    _
  %s5 = ssub.s32 1, %s3
  %s6 = scalar_select 0, %s5, %s3
  $region1: #{tpu_custom_call.1} parent=0
    #allocation2 [shape = 'u8[1024]{0}', space=vmem, size = 0x400, scoped, tag = 'output window, operand 0']
    #allocation3 [shape = 's32[2]{0}', space=sflag, size = 0x8, scoped, tag = 'scoped memory for tpu_custom_call.1']
    %7 = vsyncpa [#allocation3], 0
    %s8 = scalar_lea.sflag [#allocation3], 1
    %9 = vsyncpa %s8, 0
    loop: start=0, step=1, limit=4
    $region2: #{tpu_custom_call.1} parent=1 // loop_pre_header
      _
    $region3: #{tpu_custom_call.1} parent=1 // loop_header
      %s11 = sphi 0, %s15
      %p12 = scmp.ge.s32.totalorder %s11, 4
      %s21 = sphi 0, %s23
      %s24 = sphi 0, %s21
      %s25 = sphi 0, %s24
      %s41 = sphi 0, %s25
      %s47 = sphi 0, %s49
      %s50 = sphi 0, %s47
      %s51 = sphi 0, %s50
      %s67 = sphi 0, %s51
      %s73 = sphi 0, %s75
      %s76 = sphi 0, %s73
      %s77 = sphi 0, %s76
      %s93 = sphi 0, %s77
    $region4: #{tpu_custom_call.1} parent=1 // loop_header_branch
      %14 = sbr.rel (%p12) target = $region8
    $region5: #{tpu_custom_call.1} parent=1 // loop_body
      %s16 = ssub.s32 %s11, 1
      %s17 = ssub.s32 %s11, 2
      %s18 = sadd.s32 %s11, 1
      %s19 = ssub.s32 %s11, %s18
      %p20 = scmp.eq.s32.totalorder %s19, 0
      %s22 = sadd.s32 %s21, 1
      %s23 = scalar_select %p20, %s21, %s22
      %p26 = pneg %p20
      %p27 = scmp.eq.s32.totalorder %s11, 1
      %p28 = por %p26, %p27
      %p29 = scmp.ne.s32.totalorder %s21, %s24
      %p30 = scmp.eq.s32.totalorder %s11, 0
      %p31 = por %p29, %p30
      %p32 = scmp.ne.s32.totalorder %s21, %s24
      %p33 = scmp.eq.s32.totalorder %s16, 1
      %p34 = por %p32, %p33
      %p35 = scmp.ne.s32.totalorder %s24, %s25
      %p36 = scmp.eq.s32.totalorder %s16, 0
      %p37 = por %p35, %p36
      %p38 = scmp.ne.s32.totalorder %s24, %s25
      %p39 = scmp.eq.s32.totalorder %s17, 1
      %p40 = por %p38, %p39
      %p42 = scmp.ne.s32.totalorder %s25, %s41
      %p43 = scmp.eq.s32.totalorder %s17, 0
      %p44 = por %p42, %p43
      %s45 = ssub.s32 %s11, %s18
      %p46 = scmp.eq.s32.totalorder %s45, 0
      %s48 = sadd.s32 %s47, 1
      %s49 = scalar_select %p46, %s47, %s48
      %p52 = pneg %p46
      %p53 = scmp.eq.s32.totalorder %s11, 1
      %p54 = por %p52, %p53
      %p55 = scmp.ne.s32.totalorder %s47, %s50
      %p56 = scmp.eq.s32.totalorder %s11, 0
      %p57 = por %p55, %p56
      %p58 = scmp.ne.s32.totalorder %s47, %s50
      %p59 = scmp.eq.s32.totalorder %s16, 1
      %p60 = por %p58, %p59
      %p61 = scmp.ne.s32.totalorder %s50, %s51
      %p62 = scmp.eq.s32.totalorder %s16, 0
      %p63 = por %p61, %p62
      %p64 = scmp.ne.s32.totalorder %s50, %s51
      %p65 = scmp.eq.s32.totalorder %s17, 1
      %p66 = por %p64, %p65
      %p68 = scmp.ne.s32.totalorder %s51, %s67
      %p69 = scmp.eq.s32.totalorder %s17, 0
      %p70 = por %p68, %p69
      %s71 = ssub.s32 %s11, %s18
      %p72 = scmp.eq.s32.totalorder %s71, 0
      %s74 = sadd.s32 %s73, 1
      %s75 = scalar_select %p72, %s73, %s74
      %p78 = pneg %p72
      %p79 = scmp.eq.s32.totalorder %s11, 1
      %p80 = por %p78, %p79
      %p81 = scmp.ne.s32.totalorder %s73, %s76
      %p82 = scmp.eq.s32.totalorder %s11, 0
      %p83 = por %p81, %p82
      %p84 = scmp.ne.s32.totalorder %s73, %s76
      %p85 = scmp.eq.s32.totalorder %s16, 1
      %p86 = por %p84, %p85
      %p87 = scmp.ne.s32.totalorder %s76, %s77
      %p88 = scmp.eq.s32.totalorder %s16, 0
      %p89 = por %p87, %p88
      %p90 = scmp.ne.s32.totalorder %s76, %s77
      %p91 = scmp.eq.s32.totalorder %s17, 1
      %p92 = por %p90, %p91
      %p94 = scmp.ne.s32.totalorder %s77, %s93
      %p95 = scmp.eq.s32.totalorder %s17, 0
      %p96 = por %p94, %p95
      %p97 = scmp.le.s32.totalorder 1, %s11
      %p98 = scmp.lt.s32.totalorder %s11, 3
      %p99 = pnand %p97, %p98
      %p100 = pneg %p99
      // Predicated region
      $region9: #{tpu_custom_call.1} parent=5 // pred_check
        _
      $region10: #{tpu_custom_call.1} parent=5 // pred_check_branch
        %102 = sbr.rel (%p99) target = $region12
      $region11: #{tpu_custom_call.1} parent=5 // pred_region
        %s103 = ssub.s32 %s11, 1
      $region12: #{tpu_custom_call.1} parent=5 // pred_fallthru
        _
      %p104 = scmp.lt.s32.totalorder %s11, 2
      // Predicated region
      $region13: #{tpu_custom_call.1} parent=5 // pred_check
        %p105 = pneg %p104
      $region14: #{tpu_custom_call.1} parent=5 // pred_check_branch
        %107 = sbr.rel (%p105) target = $region16
      $region15: #{tpu_custom_call.1} parent=5 // pred_region
        // Predicated region
        $region17: #{tpu_custom_call.1} parent=15 // pred_check
          %p108 = pneg %p31
        $region18: #{tpu_custom_call.1} parent=15 // pred_check_branch
          %110 = sbr.rel (%p108) target = $region20
        $region19: #{tpu_custom_call.1} parent=15 // pred_region
          %p111 = scmp.lt.s32.totalorder %s11, 1
          %s112 = scalar_select %p111, %s11, 1
          %s113 = smul.addr %s112, 8
          %s114 = scalar_lea.vmem %s0, %s113
        $region20: #{tpu_custom_call.1} parent=15 // pred_fallthru
          _
        // Predicated region
        $region21: #{tpu_custom_call.1} parent=15 // pred_check
          %p115 = pneg %p57
        $region22: #{tpu_custom_call.1} parent=15 // pred_check_branch
          %117 = sbr.rel (%p115) target = $region24
        $region23: #{tpu_custom_call.1} parent=15 // pred_region
          %p118 = scmp.lt.s32.totalorder %s11, 1
          %s119 = scalar_select %p118, %s11, 1
          %s120 = smul.addr %s119, 8
          %s121 = scalar_lea.vmem %s1, %s120
        $region24: #{tpu_custom_call.1} parent=15 // pred_fallthru
          _
      $region16: #{tpu_custom_call.1} parent=5 // pred_fallthru
        _
      %p122 = scmp.le.s32.totalorder 1, %s11
      %p123 = scmp.lt.s32.totalorder %s11, 3
      %p124 = pnand %p122, %p123
      %p125 = pneg %p124
      // Predicated region
      $region25: #{tpu_custom_call.1} parent=5 // pred_check
        _
      $region26: #{tpu_custom_call.1} parent=5 // pred_check_branch
        %127 = sbr.rel (%p124) target = $region28
      $region27: #{tpu_custom_call.1} parent=5 // pred_region
        %s128 = ssub.s32 %s11, 1
        %p129 = scmp.lt.s32.totalorder %s16, 1
        %s130 = scalar_select %p129, %s16, 1
        %s131 = smul.addr %s130, 8
        %s132 = scalar_lea.vmem %s0, %s131
        %p133 = pneg %p37
        %p134 = pneg %p34
        %p135 = scmp.lt.s32.totalorder %s16, 1
        %s136 = scalar_select %p135, %s16, 1
        %s137 = smul.addr %s136, 8
        %s138 = scalar_lea.vmem %s1, %s137
        %p139 = pneg %p63
        %p140 = pneg %p60
        %p141 = pneg %p89
        %p142 = pneg %p86
        %s143 = sand.u32 %s76, 1
        %s144 = scalar_lea.sflag [#allocation3], %s143
        %s145 = sand.u32 %s76, 1
        %s146 = scalar_lea.vmem [#allocation2], %s145
        %p147 = scmp.lt.s32.totalorder %s16, 1
        %s148 = scalar_select %p147, %s16, 1
        %s149 = smul.addr %s148, 8
        %s150 = scalar_lea.vmem %s0, %s149
        %p151 = scmp.lt.s32.totalorder %s16, 1
        %s152 = scalar_select %p151, %s16, 1
        %s153 = smul.addr %s152, 8
        %s154 = scalar_lea.vmem %s1, %s153
        %v155 = vld [vmem:[%s150] sm:$0xff]
        %v156 = vld [vmem:[%s154] sm:$0xff]
        %v157 = vlaneseq
        %v158 = vand.u32 %v157, 127
        %vm159 = vcmask 261120
        %v160 = vsel %vm159, %v155, -inf
        %161 = vmax.xlane.f32.xlu0 %v160
        %v162 = vpop.xlane.xlu0 %161
        %vm163 = vcmask 523520
        %v164 = vsel %vm163, %v155, -inf
        %165 = vmax.xlane.f32.xlu0 %v164
        %v166 = vpop.xlane.xlu0 %165
        %vm167 = vcmask 785920
        %v168 = vsel %vm167, %v155, -inf
        %169 = vmax.xlane.f32.xlu0 %v168
        %v170 = vpop.xlane.xlu0 %169
        %vm171 = vcmask 1048320
        %v172 = vsel %vm171, %v155, -inf
        %173 = vmax.xlane.f32.xlu0 %v172
        %v174 = vpop.xlane.xlu0 %173
        %v175 = vsel %vm159, %v162, %v166
        %vm176 = vcmask 523264
        %v177 = vsel %vm176, %v175, %v170
        %vm178 = vcmask 785408
        %v179 = vsel %vm178, %v177, %v174
        %v180 = vsub.f32 %v155, %v179
        %v181 = vmul.f32 %v180, 1.442695
        %v182 = vpow.pop %v181
        %183 = vset.pattern.permute.xlu0 0
        %184 = vperm.xlu0 %183, %v156
        %v185 = vpop.permute.xlu0 %184
        %vm186 = vcmp.eq.s32.totalorder %v158, %v185
        %v187 = vsel %vm186, %v180, 0.0
        %v188 = vsel %vm159, %v187, 0.0
        %189 = vadd.xlane.f32.xlu0 %v188
        %v190 = vpop.xlane.xlu0 %189
        %v191 = vsel %vm159, %v182, 0.0
        %192 = vadd.xlane.f32.xlu0 %v191
        %v193 = vpop.xlane.xlu0 %192
        %194 = vset.pattern.permute.xlu0 1
        %195 = vperm.xlu0 %194, %v156
        %v196 = vpop.permute.xlu0 %195
        %vm197 = vcmp.eq.s32.totalorder %v158, %v196
        %199 = vrot.lane.b32.xlu0 %v180, 96
        %v200 = vpop.permute.xlu0 %199
        %v202 = vsel %vm197, %v200, 0.0
        %v203 = vsel %vm159, %v202, 0.0
        %204 = vadd.xlane.f32.xlu0 %v203
        %v205 = vpop.xlane.xlu0 %204
        %207 = vrot.lane.b32.xlu0 %v182, 96
        %v208 = vpop.permute.xlu0 %207
        %v210 = vsel %vm159, %v208, 0.0
        %211 = vadd.xlane.f32.xlu0 %v210
        %v212 = vpop.xlane.xlu0 %211
        %213 = vset.pattern.permute.xlu0 2
        %214 = vperm.xlu0 %213, %v156
        %v215 = vpop.permute.xlu0 %214
        %vm216 = vcmp.eq.s32.totalorder %v158, %v215
        %217 = vrot.lane.b32.xlu0 %v180, 64
        %v218 = vpop.permute.xlu0 %217
        %v220 = vsel %vm216, %v218, 0.0
        %v221 = vsel %vm159, %v220, 0.0
        %222 = vadd.xlane.f32.xlu0 %v221
        %v223 = vpop.xlane.xlu0 %222
        %224 = vrot.lane.b32.xlu0 %v182, 64
        %v225 = vpop.permute.xlu0 %224
        %v227 = vsel %vm159, %v225, 0.0
        %228 = vadd.xlane.f32.xlu0 %v227
        %v229 = vpop.xlane.xlu0 %228
        %230 = vset.pattern.permute.xlu0 3
        %231 = vperm.xlu0 %230, %v156
        %v232 = vpop.permute.xlu0 %231
        %vm233 = vcmp.eq.s32.totalorder %v158, %v232
        %234 = vrot.lane.b32.xlu0 %v180, 32
        %v235 = vpop.permute.xlu0 %234
        %v237 = vsel %vm233, %v235, 0.0
        %v238 = vsel %vm159, %v237, 0.0
        %239 = vadd.xlane.f32.xlu0 %v238
        %v240 = vpop.xlane.xlu0 %239
        %241 = vrot.lane.b32.xlu0 %v182, 32
        %v242 = vpop.permute.xlu0 %241
        %v244 = vsel %vm159, %v242, 0.0
        %245 = vadd.xlane.f32.xlu0 %v244
        %v246 = vpop.xlane.xlu0 %245
        %vm247 = vcmask 7168
        %v248 = vsel %vm247, %v190, %v205
        %vm249 = vcmask 15360
        %v250 = vsel %vm249, %v248, %v223
        %vm251 = vcmask 23552
        %v252 = vsel %vm251, %v250, %v240
        %v253 = vsel %vm247, %v193, %v212
        %v254 = vsel %vm249, %v253, %v229
        %v255 = vsel %vm251, %v254, %v246
        %v256 = vlog2.pop %v255
        %v257 = vmul.f32 %v256, 0.6931472
        %v258 = vsub.f32 %v252, %v257
        %v259 = vmul.f32 %v258, 1.442695
        %v260 = vpow.pop %v259
        %vm261 = vcmp.gt.s32.totalorder %v156, 0
        %v262 = vsel %vm261, 0.25, 0.75
        %v263 = vmul.f32 %v258, %v262
        %v264 = vsub.f32 1.0, %v260
        %v265 = vmul.f32 %v264, %v264
        %v266 = vmul.f32 %v265, -1.0
        %v267 = vmul.f32 %v266, %v263
        %v268 = vlaneseq
        %v269 = vshrl.u32 %v268, 7
        %s270 = smul.u32 %s16, 8
        %v271 = vstv %s270
        %v272 = vadd.s32 %v269, %v271
        %vm273 = vcmp.lt.s32.totalorder %v272, 13
        %v274 = vsel %vm273, %v267, 0.0
        %vm275 = vcmask 31744
        %v276 = vsel %vm275, %v274, 0.0
        %v277 = vrot.slane %v276, 4
        %v278 = vadd.f32 %v276, %v277
        %v279 = vrot.slane %v278, 2
        %v280 = vadd.f32 %v278, %v279
        %v281 = vrot.slane %v280, 1
        %v282 = vadd.f32 %v280, %v281
        %vm283 = vcmask 24576
        %284 = vst.msk [vmem:[%s146] sm:$0x1] %vm283, %v282
        %s285 = sand.u32 %s76, 1
        %s286 = scalar_lea.sflag [#allocation3], %s285
        %s287 = sand.u32 %s76, 1
        %s288 = scalar_lea.vmem [#allocation2], %s287
        // Predicated region
        $region29: #{tpu_custom_call.1} parent=27 // pred_check
          %p289 = pneg %p86
        $region30: #{tpu_custom_call.1} parent=27 // pred_check_branch
          %291 = sbr.rel (%p289) target = $region32
        $region31: #{tpu_custom_call.1} parent=27 // pred_region
          %s293 = ssub.s32 16, 16
          %294 = vsyncadd %s286, %s293
          %s295 = smul.addr %s16, 16
          %s296 = scalar_lea.hbm %s2, %s295
          %s298 = sshll.u32 %s288, 4
          %s299 = int_to_ptr.vmem [resolvable:$true] %s298
          %301 = dma.vmem_to_hbm [thread:$0]  %s299, 16, %s296, %s286
        $region32: #{tpu_custom_call.1} parent=27 // pred_fallthru
          _
      $region28: #{tpu_custom_call.1} parent=5 // pred_fallthru
        _
      %p302 = scmp.le.s32.totalorder 2, %s11
      // Predicated region
      $region33: #{tpu_custom_call.1} parent=5 // pred_check
        %p303 = pneg %p302
      $region34: #{tpu_custom_call.1} parent=5 // pred_check_branch
        %305 = sbr.rel (%p303) target = $region36
      $region35: #{tpu_custom_call.1} parent=5 // pred_region
        %s306 = ssub.s32 %s11, 2
        // Predicated region
        $region37: #{tpu_custom_call.1} parent=35 // pred_check
          %p307 = pneg %p92
        $region38: #{tpu_custom_call.1} parent=35 // pred_check_branch
          %309 = sbr.rel (%p307) target = $region40
        $region39: #{tpu_custom_call.1} parent=35 // pred_region
          %s310 = sand.u32 %s77, 1
          %s311 = scalar_lea.sflag [#allocation3], %s310
          %s312 = sand.u32 %s77, 1
          %s313 = scalar_lea.vmem [#allocation2], %s312
          %314 = dma.done %s311, 16
        $region40: #{tpu_custom_call.1} parent=35 // pred_fallthru
          _
      $region36: #{tpu_custom_call.1} parent=5 // pred_fallthru
        _
    $region6: #{tpu_custom_call.1} parent=1 // loop_footer
      %s15 = sadd.s32 1, %s11
    $region7: #{tpu_custom_call.1} parent=1 // loop_footer_branch
      %10 = sbr.rel target = $region3
    $region8: #{tpu_custom_call.1} parent=1 // loop_exit
      _
    %315 = vsyncpa [#allocation3], 1
    %s316 = scalar_lea.sflag [#allocation3], 1
    %317 = vsyncpa %s316, 1

</llo_original>
